<compile_context>
chip_gen: v6e
topology: v6e:2x2x1
jax: 0.10.0
libtpu: 0.0.40
codegen_flags: <defaults>
</compile_context>

<pallas_src>
import jax
import jax.numpy as jnp
import numpy as np
from jax.experimental import pallas as pl
from jax.experimental.pallas import tpu as pltpu


def pointer_kernel(p_ref, q_ref,
                   wq_w_ref, wq_b_ref,
                   wp_w_ref, wp_b_ref,
                   ws_w_ref,
                   wih_ref, bih_ref,
                   whh_ref, bhh_ref,
                   start_ref, end_ref):
    Pblk = p_ref[...]                               # (Bblk, Lp, D_in)
    Qblk = q_ref[...]                               # (Bblk, Lq, H)
    Bblk, Lp, D_in = Pblk.shape
    H = Qblk.shape[-1]

    # ---- hoisted, ha-independent term: P @ Wq + bq (shared by both passes) ----
    P2 = Pblk.reshape(Bblk * Lp, D_in)
    a_p = (jnp.dot(P2, wq_w_ref[...], preferred_element_type=jnp.float32)
           + wq_b_ref[...]).reshape(Bblk, Lp, H)    # (Bblk, Lp, H)

    ws_row = ws_w_ref[...]                          # (1, H)

    def attend(ha):                                 # ha: (Bblk, H)
        a_h = (jnp.dot(ha, wp_w_ref[...], preferred_element_type=jnp.float32)
               + wp_b_ref[...])                     # (Bblk, H)
        t = jnp.tanh(a_p + a_h[:, None, :])         # (Bblk, Lp, H)
        # Lane-dense scores: VPU multiply + reduction over H.  ws_b omitted:
        # it is a constant shift and softmax over Lp is shift-invariant.
        s = jnp.sum(t * ws_row, axis=-1)            # (Bblk, Lp), Lp on lanes
        s = s - jnp.max(s, axis=-1, keepdims=True)  # stable softmax over Lp
        e = jnp.exp(s)
        attn = e / jnp.sum(e, axis=-1, keepdims=True)       # (Bblk, Lp)
        # Context vector via VPU weighted reduction over Lp (no M=1 matvec).
        c = jnp.sum(attn[:, :, None] * Pblk, axis=1)        # (Bblk, D_in)
        return c, attn

    # ha = mean over the question tokens (torch.mean(Q, dim=1))
    ha = jnp.mean(Qblk, axis=1)                     # (Bblk, H)

    # first attention pass -> start distribution + context vector
    c, attn_start = attend(ha)
    start_ref[...] = attn_start                     # unmasked (Bblk, Lp) store

    # ---- fused GRUCell(c, ha): two (Bblk, 3H) matmuls, gate order (r, z, n) ----
    gx = (jnp.dot(c, wih_ref[...], preferred_element_type=jnp.float32)
          + bih_ref[...])                           # (Bblk, 3H)
    gh = (jnp.dot(ha, whh_ref[...], preferred_element_type=jnp.float32)
          + bhh_ref[...])                           # (Bblk, 3H)
    r = jax.nn.sigmoid(gx[:, 0:H] + gh[:, 0:H])
    z = jax.nn.sigmoid(gx[:, H:2 * H] + gh[:, H:2 * H])
    n = jnp.tanh(gx[:, 2 * H:3 * H] + r * gh[:, 2 * H:3 * H])
    ha_new = (1.0 - z) * n + z * ha                 # (Bblk, H)

    # second attention pass -> end distribution
    _, attn_end = attend(ha_new)
    end_ref[...] = attn_end


def pointer_layer(P, Q, params, *, block_b=8):
    """P: (B, Lp, D_in) context rep, Q: (B, Lq, H) question rep."""
    B, Lp, D_in = P.shape
    _, Lq, H = Q.shape
    wq_w, wq_b, wp_w, wp_b, ws_w, ws_b, wih, bih, whh, bhh = params
    del ws_b  # softmax is shift-invariant -> scalar score bias cancels exactly

    # Batch blocking: Bblk*Lp rows per MXU matmul.  Bblk is either the full
    # batch (single grid step) or a multiple of 8 (sublane-aligned output
    # blocks).  Keep Bblk modest so double-buffered P/Q blocks + weights fit
    # the scoped VMEM budget (32 MiB scoped / 64 MiB physical on v7x).
    Bblk = min(block_b, B)
    n_blocks = (B + Bblk - 1) // Bblk
    Bpad = n_blocks * Bblk
    if Bpad != B:
        # zero padding is softmax-safe (uniform distribution, no NaN); sliced off below
        P = jnp.pad(P, ((0, Bpad - B), (0, 0), (0, 0)))
        Q = jnp.pad(Q, ((0, Bpad - B), (0, 0), (0, 0)))

    def shared(shape):
        # weight tensors: same block every grid step (stay resident in VMEM)
        return pl.BlockSpec(shape, lambda b: (0,) * len(shape))

    in_specs = [
        pl.BlockSpec((Bblk, Lp, D_in), lambda b: (b, 0, 0)),   # P slab
        pl.BlockSpec((Bblk, Lq, H), lambda b: (b, 0, 0)),      # Q slab
        shared((D_in, H)), shared((1, H)),                     # wq
        shared((H, H)), shared((1, H)),                        # wp
        shared((1, H)),                                        # ws (row form)
        shared((D_in, 3 * H)), shared((1, 3 * H)),             # GRU W_ih, b_ih
        shared((H, 3 * H)), shared((1, 3 * H)),                # GRU W_hh, b_hh
    ]
    out_specs = [
        pl.BlockSpec((Bblk, Lp), lambda b: (b, 0)),            # start
        pl.BlockSpec((Bblk, Lp), lambda b: (b, 0)),            # end
    ]
    out_shape = [jax.ShapeDtypeStruct((Bpad, Lp), jnp.float32),
                 jax.ShapeDtypeStruct((Bpad, Lp), jnp.float32)]

    start, end = pl.pallas_call(
        pointer_kernel,
        grid_spec=pltpu.PrefetchScalarGridSpec(
            num_scalar_prefetch=0,
            grid=(n_blocks,),
            in_specs=in_specs,
            out_specs=out_specs,
        ),
        out_shape=out_shape,
        compiler_params=pltpu.CompilerParams(
            dimension_semantics=("parallel",)),   # batch blocks independent -> both v7x TCs
    )(P, Q, wq_w, wq_b, wp_w, wp_b, ws_w, wih, bih, whh, bhh)
    return start[:B], end[:B]


def make_params(key, input_size, hidden_size):
    """Deterministic synthetic parameters (PyTorch-style uniform init)."""
    ks = jax.random.split(key, 10)

    def uni(k, shape, fan_in):
        lim = 1.0 / np.sqrt(fan_in)
        return jax.random.uniform(k, shape, jnp.float32, -lim, lim)

    wq_w = uni(ks[0], (input_size, hidden_size), input_size)
    wq_b = uni(ks[1], (1, hidden_size), input_size)
    wp_w = uni(ks[2], (hidden_size, hidden_size), hidden_size)
    wp_b = uni(ks[3], (1, hidden_size), hidden_size)
    # wv of AttentionLayer is unused in PointerLayer.forward (v is None) -> omitted.
    ws_w = uni(ks[4], (1, hidden_size), hidden_size)        # row form of Linear(H,1).weight
    ws_b = uni(ks[5], (1, 1), hidden_size)
    wih = uni(ks[6], (input_size, 3 * hidden_size), hidden_size)   # columns = [r | z | n]
    bih = uni(ks[7], (1, 3 * hidden_size), hidden_size)
    whh = uni(ks[8], (hidden_size, 3 * hidden_size), hidden_size)
    bhh = uni(ks[9], (1, 3 * hidden_size), hidden_size)
    return (wq_w, wq_b, wp_w, wp_b, ws_w, ws_b, wih, bih, whh, bhh)


def pointer_layer_ref(P, Q, params):
    """Pure-JAX reference of the PyTorch PointerLayer forward."""
    wq_w, wq_b, wp_w, wp_b, ws_w, ws_b, wih, bih, whh, bhh = params
    H = Q.shape[-1]

    def attend(ha):
        a = P @ wq_w + wq_b + (ha @ wp_w + wp_b)[:, None, :]
        s = jnp.tanh(a) @ ws_w[0] + ws_b[0, 0]              # (B, Lp)
        attn = jax.nn.softmax(s, axis=1)
        c = jnp.einsum('bl,bld->bd', attn, P)
        return c, attn

    ha = jnp.mean(Q, axis=1)
    c, start = attend(ha)
    gx = c @ wih + bih
    gh = ha @ whh + bhh
    r = jax.nn.sigmoid(gx[:, :H] + gh[:, :H])
    z = jax.nn.sigmoid(gx[:, H:2 * H] + gh[:, H:2 * H])
    n = jnp.tanh(gx[:, 2 * H:] + r * gh[:, 2 * H:])
    ha = (1.0 - z) * n + z * ha
    _, end = attend(ha)
    return start, end


if __name__ == "__main__":
    # PointerLayer(input_size=hidden*4, hidden_size=hidden*2) -> D_in = 2*H
    B, Lp, Lq = 2, 16, 8
    input_size, hidden_size = 64, 32

    key = jax.random.PRNGKey(0)
    kP, kQ, kW = jax.random.split(key, 3)
    P = jax.random.normal(kP, (B, Lp, input_size), jnp.float32)
    Q = jax.random.normal(kQ, (B, Lq, hidden_size), jnp.float32)
    params = make_params(kW, input_size, hidden_size)

    start, end = pointer_layer(P, Q, params)
    jax.block_until_ready((start, end))

    start_ref, end_ref = pointer_layer_ref(P, Q, params)
    np.testing.assert_allclose(np.asarray(start), np.asarray(start_ref),
                               rtol=1e-3, atol=1e-4)
    np.testing.assert_allclose(np.asarray(end), np.asarray(end_ref),
                               rtol=1e-3, atol=1e-4)

    print("KERNEL_OK")
</pallas_src>

<mosaic_0001>
module attributes {stable_mosaic.version = 11 : i64} {
  func.func @pointer_kernel(%arg0: i32, %arg1: memref<2x16x64xf32, #tpu.memory_space<vmem>>, %arg2: memref<2x8x32xf32, #tpu.memory_space<vmem>>, %arg3: memref<64x32xf32, #tpu.memory_space<vmem>>, %arg4: memref<1x32xf32, #tpu.memory_space<vmem>>, %arg5: memref<32x32xf32, #tpu.memory_space<vmem>>, %arg6: memref<1x32xf32, #tpu.memory_space<vmem>>, %arg7: memref<1x32xf32, #tpu.memory_space<vmem>>, %arg8: memref<64x96xf32, #tpu.memory_space<vmem>>, %arg9: memref<1x96xf32, #tpu.memory_space<vmem>>, %arg10: memref<32x96xf32, #tpu.memory_space<vmem>>, %arg11: memref<1x96xf32, #tpu.memory_space<vmem>>, %arg12: memref<2x16xf32, #tpu.memory_space<vmem>>, %arg13: memref<2x16xf32, #tpu.memory_space<vmem>>) attributes {dimension_semantics = [#tpu.dimension_semantics<parallel>], iteration_bounds = array<i64: 1>, scalar_prefetch = 0 : i64, scratch_operands = 0 : i64, tpu.core_type = #tpu.core_type<tc>, window_params = [{transform_indices = @transform_0, window_bounds = array<i64: 2, 16, 64>}, {transform_indices = @transform_1, window_bounds = array<i64: 2, 8, 32>}, {pipeline_mode = #tpu.pipeline_mode<synchronous>, transform_indices = @transform_2, window_bounds = array<i64: 64, 32>}, {pipeline_mode = #tpu.pipeline_mode<synchronous>, transform_indices = @transform_3, window_bounds = array<i64: 1, 32>}, {pipeline_mode = #tpu.pipeline_mode<synchronous>, transform_indices = @transform_4, window_bounds = array<i64: 32, 32>}, {pipeline_mode = #tpu.pipeline_mode<synchronous>, transform_indices = @transform_5, window_bounds = array<i64: 1, 32>}, {pipeline_mode = #tpu.pipeline_mode<synchronous>, transform_indices = @transform_6, window_bounds = array<i64: 1, 32>}, {pipeline_mode = #tpu.pipeline_mode<synchronous>, transform_indices = @transform_7, window_bounds = array<i64: 64, 96>}, {pipeline_mode = #tpu.pipeline_mode<synchronous>, transform_indices = @transform_8, window_bounds = array<i64: 1, 96>}, {pipeline_mode = #tpu.pipeline_mode<synchronous>, transform_indices = @transform_9, window_bounds = array<i64: 32, 96>}, {pipeline_mode = #tpu.pipeline_mode<synchronous>, transform_indices = @transform_10, window_bounds = array<i64: 1, 96>}, {transform_indices = @transform_11, window_bounds = array<i64: 2, 16>}, {transform_indices = @transform_12, window_bounds = array<i64: 2, 16>}]} {
    %c0 = arith.constant 0 : index
    %c0_0 = arith.constant 0 : index
    %c0_1 = arith.constant 0 : index
    %0 = vector.load %arg1[%c0, %c0_0, %c0_1] : memref<2x16x64xf32, #tpu.memory_space<vmem>>, vector<2x16x64xf32>
    %c0_2 = arith.constant 0 : index
    %c0_3 = arith.constant 0 : index
    %c0_4 = arith.constant 0 : index
    %1 = vector.load %arg2[%c0_2, %c0_3, %c0_4] : memref<2x8x32xf32, #tpu.memory_space<vmem>>, vector<2x8x32xf32>
    %2 = vector.shape_cast %0 : vector<2x16x64xf32> to vector<32x64xf32>
    %c0_5 = arith.constant 0 : index
    %c0_6 = arith.constant 0 : index
    %3 = vector.load %arg3[%c0_5, %c0_6] : memref<64x32xf32, #tpu.memory_space<vmem>>, vector<64x32xf32>
    %cst = arith.constant dense<0.000000e+00> : vector<32x32xf32>
    %4 = tpu.matmul %2, %3, %cst {dimension_numbers = #tpu.dot_dimension_numbers<[1], [0], [0], [1], [0, 0, 1, 1], [], []>} : vector<32x64xf32>, vector<64x32xf32>, vector<32x32xf32> -> vector<32x32xf32>
    %c0_7 = arith.constant 0 : index
    %c0_8 = arith.constant 0 : index
    %5 = vector.load %arg4[%c0_7, %c0_8] : memref<1x32xf32, #tpu.memory_space<vmem>>, vector<1x32xf32>
    %6 = vector.broadcast %5 : vector<1x32xf32> to vector<32x32xf32>
    %7 = arith.addf %4, %6 : vector<32x32xf32>
    %8 = vector.shape_cast %7 : vector<32x32xf32> to vector<2x16x32xf32>
    %c0_9 = arith.constant 0 : index
    %c0_10 = arith.constant 0 : index
    %9 = vector.load %arg7[%c0_9, %c0_10] : memref<1x32xf32, #tpu.memory_space<vmem>>, vector<1x32xf32>
    %cst_11 = arith.constant dense<0.000000e+00> : vector<2x32xf32>
    %10 = vector.multi_reduction <add>, %1, %cst_11 [1] : vector<2x8x32xf32> to vector<2x32xf32>
    %cst_12 = arith.constant 8.000000e+00 : f32
    %11 = vector.broadcast %cst_12 : f32 to vector<2x32xf32>
    %12 = arith.divf %10, %11 : vector<2x32xf32>
    %c0_13 = arith.constant 0 : index
    %c0_14 = arith.constant 0 : index
    %13 = vector.load %arg5[%c0_13, %c0_14] : memref<32x32xf32, #tpu.memory_space<vmem>>, vector<32x32xf32>
    %cst_15 = arith.constant dense<0.000000e+00> : vector<2x32xf32>
    %14 = tpu.matmul %12, %13, %cst_15 {dimension_numbers = #tpu.dot_dimension_numbers<[1], [0], [0], [1], [0, 0, 1, 1], [], []>} : vector<2x32xf32>, vector<32x32xf32>, vector<2x32xf32> -> vector<2x32xf32>
    %c0_16 = arith.constant 0 : index
    %c0_17 = arith.constant 0 : index
    %15 = vector.load %arg6[%c0_16, %c0_17] : memref<1x32xf32, #tpu.memory_space<vmem>>, vector<1x32xf32>
    %16 = vector.broadcast %15 : vector<1x32xf32> to vector<2x32xf32>
    %17 = arith.addf %14, %16 : vector<2x32xf32>
    %18 = vector.shape_cast %17 : vector<2x32xf32> to vector<2x1x32xf32>
    %19 = vector.broadcast %18 : vector<2x1x32xf32> to vector<2x16x32xf32>
    %20 = arith.addf %8, %19 : vector<2x16x32xf32>
    %21 = math.tanh %20 : vector<2x16x32xf32>
    %22 = vector.shape_cast %9 : vector<1x32xf32> to vector<1x1x32xf32>
    %23 = vector.broadcast %22 : vector<1x1x32xf32> to vector<2x16x32xf32>
    %24 = arith.mulf %21, %23 : vector<2x16x32xf32>
    %cst_18 = arith.constant dense<0.000000e+00> : vector<2x16xf32>
    %25 = vector.multi_reduction <add>, %24, %cst_18 [2] : vector<2x16x32xf32> to vector<2x16xf32>
    %cst_19 = arith.constant dense<0xFF800000> : vector<2xf32>
    %26 = vector.multi_reduction <maximumf>, %25, %cst_19 [1] : vector<2x16xf32> to vector<2xf32>
    %27 = vector.shape_cast %26 : vector<2xf32> to vector<2x1xf32>
    %28 = vector.broadcast %27 : vector<2x1xf32> to vector<2x16xf32>
    %29 = arith.subf %25, %28 : vector<2x16xf32>
    %30 = math.exp %29 : vector<2x16xf32>
    %cst_20 = arith.constant dense<0.000000e+00> : vector<2xf32>
    %31 = vector.multi_reduction <add>, %30, %cst_20 [1] : vector<2x16xf32> to vector<2xf32>
    %32 = vector.shape_cast %31 : vector<2xf32> to vector<2x1xf32>
    %33 = vector.broadcast %32 : vector<2x1xf32> to vector<2x16xf32>
    %34 = arith.divf %30, %33 : vector<2x16xf32>
    %35 = vector.shape_cast %34 : vector<2x16xf32> to vector<2x16x1xf32>
    %36 = vector.broadcast %35 : vector<2x16x1xf32> to vector<2x16x64xf32>
    %37 = arith.mulf %36, %0 : vector<2x16x64xf32>
    %cst_21 = arith.constant dense<0.000000e+00> : vector<2x64xf32>
    %38 = vector.multi_reduction <add>, %37, %cst_21 [1] : vector<2x16x64xf32> to vector<2x64xf32>
    %c0_22 = arith.constant 0 : index
    %c0_23 = arith.constant 0 : index
    %39 = vector.load %arg12[%c0_22, %c0_23] : memref<2x16xf32, #tpu.memory_space<vmem>>, vector<2x16xf32>
    tpu.vector_store %arg12[%c0_22, %c0_23], %34 {strides = array<i32>} : memref<2x16xf32, #tpu.memory_space<vmem>>, vector<2x16xf32>,
    %c0_24 = arith.constant 0 : index
    %c0_25 = arith.constant 0 : index
    %40 = vector.load %arg8[%c0_24, %c0_25] : memref<64x96xf32, #tpu.memory_space<vmem>>, vector<64x96xf32>
    %cst_26 = arith.constant dense<0.000000e+00> : vector<2x96xf32>
    %41 = tpu.matmul %38, %40, %cst_26 {dimension_numbers = #tpu.dot_dimension_numbers<[1], [0], [0], [1], [0, 0, 1, 1], [], []>} : vector<2x64xf32>, vector<64x96xf32>, vector<2x96xf32> -> vector<2x96xf32>
    %c0_27 = arith.constant 0 : index
    %c0_28 = arith.constant 0 : index
    %42 = vector.load %arg9[%c0_27, %c0_28] : memref<1x96xf32, #tpu.memory_space<vmem>>, vector<1x96xf32>
    %43 = vector.broadcast %42 : vector<1x96xf32> to vector<2x96xf32>
    %44 = arith.addf %41, %43 : vector<2x96xf32>
    %c0_29 = arith.constant 0 : index
    %c0_30 = arith.constant 0 : index
    %45 = vector.load %arg10[%c0_29, %c0_30] : memref<32x96xf32, #tpu.memory_space<vmem>>, vector<32x96xf32>
    %cst_31 = arith.constant dense<0.000000e+00> : vector<2x96xf32>
    %46 = tpu.matmul %12, %45, %cst_31 {dimension_numbers = #tpu.dot_dimension_numbers<[1], [0], [0], [1], [0, 0, 1, 1], [], []>} : vector<2x32xf32>, vector<32x96xf32>, vector<2x96xf32> -> vector<2x96xf32>
    %c0_32 = arith.constant 0 : index
    %c0_33 = arith.constant 0 : index
    %47 = vector.load %arg11[%c0_32, %c0_33] : memref<1x96xf32, #tpu.memory_space<vmem>>, vector<1x96xf32>
    %48 = vector.broadcast %47 : vector<1x96xf32> to vector<2x96xf32>
    %49 = arith.addf %46, %48 : vector<2x96xf32>
    %50 = vector.extract_strided_slice %44 {offsets = [0, 0], sizes = [2, 32], strides = [1, 1]} : vector<2x96xf32> to vector<2x32xf32>
    %51 = vector.extract_strided_slice %49 {offsets = [0, 0], sizes = [2, 32], strides = [1, 1]} : vector<2x96xf32> to vector<2x32xf32>
    %52 = arith.addf %50, %51 : vector<2x32xf32>
    %53 = arith.negf %52 : vector<2x32xf32>
    %54 = math.exp %53 : vector<2x32xf32>
    %cst_34 = arith.constant 1.000000e+00 : f32
    %55 = vector.broadcast %cst_34 : f32 to vector<2x32xf32>
    %56 = arith.addf %55, %54 : vector<2x32xf32>
    %57 = arith.divf %55, %56 : vector<2x32xf32>
    %58 = vector.extract_strided_slice %44 {offsets = [0, 32], sizes = [2, 32], strides = [1, 1]} : vector<2x96xf32> to vector<2x32xf32>
    %59 = vector.extract_strided_slice %49 {offsets = [0, 32], sizes = [2, 32], strides = [1, 1]} : vector<2x96xf32> to vector<2x32xf32>
    %60 = arith.addf %58, %59 : vector<2x32xf32>
    %61 = arith.negf %60 : vector<2x32xf32>
    %62 = math.exp %61 : vector<2x32xf32>
    %cst_35 = arith.constant 1.000000e+00 : f32
    %63 = vector.broadcast %cst_35 : f32 to vector<2x32xf32>
    %64 = arith.addf %63, %62 : vector<2x32xf32>
    %65 = arith.divf %63, %64 : vector<2x32xf32>
    %66 = vector.extract_strided_slice %44 {offsets = [0, 64], sizes = [2, 32], strides = [1, 1]} : vector<2x96xf32> to vector<2x32xf32>
    %67 = vector.extract_strided_slice %49 {offsets = [0, 64], sizes = [2, 32], strides = [1, 1]} : vector<2x96xf32> to vector<2x32xf32>
    %68 = arith.mulf %57, %67 : vector<2x32xf32>
    %69 = arith.addf %66, %68 : vector<2x32xf32>
    %70 = math.tanh %69 : vector<2x32xf32>
    %cst_36 = arith.constant 1.000000e+00 : f32
    %71 = vector.broadcast %cst_36 : f32 to vector<2x32xf32>
    %72 = arith.subf %71, %65 : vector<2x32xf32>
    %73 = arith.mulf %72, %70 : vector<2x32xf32>
    %74 = arith.mulf %65, %12 : vector<2x32xf32>
    %75 = arith.addf %73, %74 : vector<2x32xf32>
    %c0_37 = arith.constant 0 : index
    %c0_38 = arith.constant 0 : index
    %76 = vector.load %arg5[%c0_37, %c0_38] : memref<32x32xf32, #tpu.memory_space<vmem>>, vector<32x32xf32>
    %cst_39 = arith.constant dense<0.000000e+00> : vector<2x32xf32>
    %77 = tpu.matmul %75, %76, %cst_39 {dimension_numbers = #tpu.dot_dimension_numbers<[1], [0], [0], [1], [0, 0, 1, 1], [], []>} : vector<2x32xf32>, vector<32x32xf32>, vector<2x32xf32> -> vector<2x32xf32>
    %c0_40 = arith.constant 0 : index
    %c0_41 = arith.constant 0 : index
    %78 = vector.load %arg6[%c0_40, %c0_41] : memref<1x32xf32, #tpu.memory_space<vmem>>, vector<1x32xf32>
    %79 = vector.broadcast %78 : vector<1x32xf32> to vector<2x32xf32>
    %80 = arith.addf %77, %79 : vector<2x32xf32>
    %81 = vector.shape_cast %80 : vector<2x32xf32> to vector<2x1x32xf32>
    %82 = vector.broadcast %81 : vector<2x1x32xf32> to vector<2x16x32xf32>
    %83 = arith.addf %8, %82 : vector<2x16x32xf32>
    %84 = math.tanh %83 : vector<2x16x32xf32>
    %85 = vector.shape_cast %9 : vector<1x32xf32> to vector<1x1x32xf32>
    %86 = vector.broadcast %85 : vector<1x1x32xf32> to vector<2x16x32xf32>
    %87 = arith.mulf %84, %86 : vector<2x16x32xf32>
    %cst_42 = arith.constant dense<0.000000e+00> : vector<2x16xf32>
    %88 = vector.multi_reduction <add>, %87, %cst_42 [2] : vector<2x16x32xf32> to vector<2x16xf32>
    %cst_43 = arith.constant dense<0xFF800000> : vector<2xf32>
    %89 = vector.multi_reduction <maximumf>, %88, %cst_43 [1] : vector<2x16xf32> to vector<2xf32>
    %90 = vector.shape_cast %89 : vector<2xf32> to vector<2x1xf32>
    %91 = vector.broadcast %90 : vector<2x1xf32> to vector<2x16xf32>
    %92 = arith.subf %88, %91 : vector<2x16xf32>
    %93 = math.exp %92 : vector<2x16xf32>
    %cst_44 = arith.constant dense<0.000000e+00> : vector<2xf32>
    %94 = vector.multi_reduction <add>, %93, %cst_44 [1] : vector<2x16xf32> to vector<2xf32>
    %95 = vector.shape_cast %94 : vector<2xf32> to vector<2x1xf32>
    %96 = vector.broadcast %95 : vector<2x1xf32> to vector<2x16xf32>
    %97 = arith.divf %93, %96 : vector<2x16xf32>
    %c0_45 = arith.constant 0 : index
    %c0_46 = arith.constant 0 : index
    %98 = vector.load %arg13[%c0_45, %c0_46] : memref<2x16xf32, #tpu.memory_space<vmem>>, vector<2x16xf32>
    tpu.vector_store %arg13[%c0_45, %c0_46], %97 {strides = array<i32>} : memref<2x16xf32, #tpu.memory_space<vmem>>, vector<2x16xf32>,
    return
  }
  func.func @transform_0(%arg0: i32) -> (i32, i32, i32) {
    %c0_i32 = arith.constant 0 : i32
    %c0_i32_0 = arith.constant 0 : i32
    %c0_i32_1 = arith.constant 0 : i32
    return %arg0, %c0_i32, %c0_i32_0 : i32, i32, i32
  }
  func.func @transform_1(%arg0: i32) -> (i32, i32, i32) {
    %c0_i32 = arith.constant 0 : i32
    %c0_i32_0 = arith.constant 0 : i32
    %c0_i32_1 = arith.constant 0 : i32
    return %arg0, %c0_i32, %c0_i32_0 : i32, i32, i32
  }
  func.func @transform_2(%arg0: i32) -> (i32, i32) {
    %c0_i32 = arith.constant 0 : i32
    %c0_i32_0 = arith.constant 0 : i32
    %c0_i32_1 = arith.constant 0 : i32
    return %c0_i32, %c0_i32_0 : i32, i32
  }
  func.func @transform_3(%arg0: i32) -> (i32, i32) {
    %c0_i32 = arith.constant 0 : i32
    %c0_i32_0 = arith.constant 0 : i32
    %c0_i32_1 = arith.constant 0 : i32
    return %c0_i32, %c0_i32_0 : i32, i32
  }
  func.func @transform_4(%arg0: i32) -> (i32, i32) {
    %c0_i32 = arith.constant 0 : i32
    %c0_i32_0 = arith.constant 0 : i32
    %c0_i32_1 = arith.constant 0 : i32
    return %c0_i32, %c0_i32_0 : i32, i32
  }
  func.func @transform_5(%arg0: i32) -> (i32, i32) {
    %c0_i32 = arith.constant 0 : i32
    %c0_i32_0 = arith.constant 0 : i32
    %c0_i32_1 = arith.constant 0 : i32
    return %c0_i32, %c0_i32_0 : i32, i32
  }
  func.func @transform_6(%arg0: i32) -> (i32, i32) {
    %c0_i32 = arith.constant 0 : i32
    %c0_i32_0 = arith.constant 0 : i32
    %c0_i32_1 = arith.constant 0 : i32
    return %c0_i32, %c0_i32_0 : i32, i32
  }
  func.func @transform_7(%arg0: i32) -> (i32, i32) {
    %c0_i32 = arith.constant 0 : i32
    %c0_i32_0 = arith.constant 0 : i32
    %c0_i32_1 = arith.constant 0 : i32
    return %c0_i32, %c0_i32_0 : i32, i32
  }
  func.func @transform_8(%arg0: i32) -> (i32, i32) {
    %c0_i32 = arith.constant 0 : i32
    %c0_i32_0 = arith.constant 0 : i32
    %c0_i32_1 = arith.constant 0 : i32
    return %c0_i32, %c0_i32_0 : i32, i32
  }
  func.func @transform_9(%arg0: i32) -> (i32, i32) {
    %c0_i32 = arith.constant 0 : i32
    %c0_i32_0 = arith.constant 0 : i32
    %c0_i32_1 = arith.constant 0 : i32
    return %c0_i32, %c0_i32_0 : i32, i32
  }
  func.func @transform_10(%arg0: i32) -> (i32, i32) {
    %c0_i32 = arith.constant 0 : i32
    %c0_i32_0 = arith.constant 0 : i32
    %c0_i32_1 = arith.constant 0 : i32
    return %c0_i32, %c0_i32_0 : i32, i32
  }
  func.func @transform_11(%arg0: i32) -> (i32, i32) {
    %c0_i32 = arith.constant 0 : i32
    %c0_i32_0 = arith.constant 0 : i32
    return %arg0, %c0_i32 : i32, i32
  }
  func.func @transform_12(%arg0: i32) -> (i32, i32) {
    %c0_i32 = arith.constant 0 : i32
    %c0_i32_0 = arith.constant 0 : i32
    return %arg0, %c0_i32 : i32, i32
  }
}

</mosaic_0001>

<llo_original>
// kernel: tpu_custom_call.1
$region0: #{tpu_custom_call.1}
  #allocation0 [shape = 'u32[]', space=smem, size = 0x4, offset = 0x4, fixed_abs, tag = 'smem constant byte address 0x4 - core index']
  #allocation1 [shape = 'u32[144,128]{1,0:T(1,128)}', space=vmem, size = 0x12000, scoped, tag = 'internal scratch']
  %s0 = inlined_call_operand.vmem [shape: f32[2,16,64], index: 0, kind: input, shape index: {}]
  %s1 = inlined_call_operand.hbm [shape: f32[2,8,32], index: 1, kind: input, shape index: {}]
  %s2 = inlined_call_operand.vmem [shape: f32[64,32], index: 2, kind: input, shape index: {}]
  %s3 = inlined_call_operand.vmem [shape: f32[1,32], index: 3, kind: input, shape index: {}]
  %s4 = inlined_call_operand.hbm [shape: f32[32,32], index: 4, kind: input, shape index: {}]
  %s5 = inlined_call_operand.vmem [shape: f32[1,32], index: 5, kind: input, shape index: {}]
  %s6 = inlined_call_operand.vmem [shape: f32[1,32], index: 6, kind: input, shape index: {}]
  %s7 = inlined_call_operand.vmem [shape: f32[64,96], index: 7, kind: input, shape index: {}]
  %s8 = inlined_call_operand.vmem [shape: f32[1,96], index: 8, kind: input, shape index: {}]
  %s9 = inlined_call_operand.hbm [shape: f32[32,96], index: 9, kind: input, shape index: {}]
  %s10 = inlined_call_operand.vmem [shape: f32[1,96], index: 10, kind: input, shape index: {}]
  %s11 = inlined_call_operand.hbm [shape: f32[2,16], index: 11, kind: output, shape index: {0}]
  %s12 = inlined_call_operand.hbm [shape: f32[2,16], index: 12, kind: output, shape index: {1}]
  %13 = xla_tuple %s11, %s12
  %s14 = sld [smem:[#allocation0]]
  $region74: #{tpu_custom_call.1} parent=0
    _
  %s16 = ssub.s32 1, %s14
  %s17 = scalar_select 0, %s16, %s14
  $region1: #{tpu_custom_call.1} parent=0
    #allocation2 [shape = 'u8[8192]{0}', space=vmem, size = 0x2000, scoped, tag = 'input window, operand 1, single buffered']
    #allocation3 [shape = 's32[1]{0}', space=sflag, size = 0x4, scoped, tag = 'scoped memory for tpu_custom_call.1']
    #allocation4 [shape = 's32[1]{0}', space=sflag, size = 0x4, scoped, tag = 'scoped memory for tpu_custom_call.1']
    #allocation5 [shape = 'u8[16384]{0}', space=vmem, size = 0x4000, scoped, tag = 'input window, operand 4, single buffered']
    #allocation6 [shape = 's32[1]{0}', space=sflag, size = 0x4, scoped, tag = 'scoped memory for tpu_custom_call.1']
    #allocation7 [shape = 'u8[16384]{0}', space=vmem, size = 0x4000, scoped, tag = 'input window, operand 9, single buffered']
    #allocation8 [shape = 'u8[1024]{0}', space=vmem, size = 0x400, scoped, tag = 'output window, operand 0, single buffered']
    #allocation9 [shape = 'u8[1024]{0}', space=vmem, size = 0x400, scoped, tag = 'output window, operand 1, single buffered']
    #allocation10 [shape = 's32[1]{0}', space=sflag, size = 0x4, scoped, tag = 'scoped memory for tpu_custom_call.1']
    %18 = vsyncpa [#allocation3], 0
    %19 = vsyncpa [#allocation6], 0
    %20 = vsyncpa [#allocation4], 0
    %21 = vsyncpa [#allocation10], 0
    // Predicated region
    $region2: #{tpu_custom_call.1} parent=1 // pred_check
      _
    $region3: #{tpu_custom_call.1} parent=1 // pred_check_branch
      %23 = sbr.rel (0) target = $region5
    $region4: #{tpu_custom_call.1} parent=1 // pred_region
      _
    $region5: #{tpu_custom_call.1} parent=1 // pred_fallthru
      _
    // Predicated region
    $region6: #{tpu_custom_call.1} parent=1 // pred_check
      _
    $region7: #{tpu_custom_call.1} parent=1 // pred_check_branch
      %25 = sbr.rel (0) target = $region9
    $region8: #{tpu_custom_call.1} parent=1 // pred_region
      %s27 = ssub.s32 256, 256
      %28 = vsyncadd [#allocation3], %s27
      %s29 = sshll.u32 [#allocation2], 4
      %s30 = int_to_ptr.vmem [resolvable:$true] %s29
      %35 = dma.hbm_to_vmem [thread:$0]  %s1, 256, %s30, [#allocation3], 128, 128, 8
    $region9: #{tpu_custom_call.1} parent=1 // pred_fallthru
      _
    // Predicated region
    $region10: #{tpu_custom_call.1} parent=1 // pred_check
      _
    $region11: #{tpu_custom_call.1} parent=1 // pred_check_branch
      %37 = sbr.rel (0) target = $region13
    $region12: #{tpu_custom_call.1} parent=1 // pred_region
      _
    $region13: #{tpu_custom_call.1} parent=1 // pred_fallthru
      _
    // Predicated region
    $region14: #{tpu_custom_call.1} parent=1 // pred_check
      _
    $region15: #{tpu_custom_call.1} parent=1 // pred_check_branch
      %39 = sbr.rel (0) target = $region17
    $region16: #{tpu_custom_call.1} parent=1 // pred_region
      _
    $region17: #{tpu_custom_call.1} parent=1 // pred_fallthru
      _
    // Predicated region
    $region18: #{tpu_custom_call.1} parent=1 // pred_check
      _
    $region19: #{tpu_custom_call.1} parent=1 // pred_check_branch
      %41 = sbr.rel (0) target = $region21
    $region20: #{tpu_custom_call.1} parent=1 // pred_region
      %s43 = ssub.s32 512, 512
      %44 = vsyncadd [#allocation6], %s43
      %s45 = sshll.u32 [#allocation5], 4
      %s46 = int_to_ptr.vmem [resolvable:$true] %s45
      %51 = dma.hbm_to_vmem [thread:$0]  %s4, 512, %s46, [#allocation6], 128, 128, 8
    $region21: #{tpu_custom_call.1} parent=1 // pred_fallthru
      _
    // Predicated region
    $region22: #{tpu_custom_call.1} parent=1 // pred_check
      _
    $region23: #{tpu_custom_call.1} parent=1 // pred_check_branch
      %53 = sbr.rel (0) target = $region25
    $region24: #{tpu_custom_call.1} parent=1 // pred_region
      _
    $region25: #{tpu_custom_call.1} parent=1 // pred_fallthru
      _
    // Predicated region
    $region26: #{tpu_custom_call.1} parent=1 // pred_check
      _
    $region27: #{tpu_custom_call.1} parent=1 // pred_check_branch
      %55 = sbr.rel (0) target = $region29
    $region28: #{tpu_custom_call.1} parent=1 // pred_region
      _
    $region29: #{tpu_custom_call.1} parent=1 // pred_fallthru
      _
    // Predicated region
    $region30: #{tpu_custom_call.1} parent=1 // pred_check
      _
    $region31: #{tpu_custom_call.1} parent=1 // pred_check_branch
      %57 = sbr.rel (0) target = $region33
    $region32: #{tpu_custom_call.1} parent=1 // pred_region
      _
    $region33: #{tpu_custom_call.1} parent=1 // pred_fallthru
      _
    // Predicated region
    $region34: #{tpu_custom_call.1} parent=1 // pred_check
      _
    $region35: #{tpu_custom_call.1} parent=1 // pred_check_branch
      %59 = sbr.rel (0) target = $region37
    $region36: #{tpu_custom_call.1} parent=1 // pred_region
      _
    $region37: #{tpu_custom_call.1} parent=1 // pred_fallthru
      _
    // Predicated region
    $region38: #{tpu_custom_call.1} parent=1 // pred_check
      _
    $region39: #{tpu_custom_call.1} parent=1 // pred_check_branch
      %61 = sbr.rel (0) target = $region41
    $region40: #{tpu_custom_call.1} parent=1 // pred_region
      %s63 = ssub.s32 512, 512
      %64 = vsyncadd [#allocation6], %s63
      %s65 = sshll.u32 [#allocation7], 4
      %s66 = int_to_ptr.vmem [resolvable:$true] %s65
      %71 = dma.hbm_to_vmem [thread:$0]  %s9, 512, %s66, [#allocation6], 128, 128, 8
    $region41: #{tpu_custom_call.1} parent=1 // pred_fallthru
      _
    // Predicated region
    $region42: #{tpu_custom_call.1} parent=1 // pred_check
      _
    $region43: #{tpu_custom_call.1} parent=1 // pred_check_branch
      %73 = sbr.rel (0) target = $region45
    $region44: #{tpu_custom_call.1} parent=1 // pred_region
      _
    $region45: #{tpu_custom_call.1} parent=1 // pred_fallthru
      _
    // Predicated region
    $region46: #{tpu_custom_call.1} parent=1 // pred_check
      _
    $region47: #{tpu_custom_call.1} parent=1 // pred_check_branch
      %75 = sbr.rel (0) target = $region49
    $region48: #{tpu_custom_call.1} parent=1 // pred_region
      %76 = dma.done [#allocation3], 256
    $region49: #{tpu_custom_call.1} parent=1 // pred_fallthru
      _
    // Predicated region
    $region50: #{tpu_custom_call.1} parent=1 // pred_check
      _
    $region51: #{tpu_custom_call.1} parent=1 // pred_check_branch
      %78 = sbr.rel (0) target = $region53
    $region52: #{tpu_custom_call.1} parent=1 // pred_region
      %79 = dma.done [#allocation6], 512
    $region53: #{tpu_custom_call.1} parent=1 // pred_fallthru
      _
    // Predicated region
    $region54: #{tpu_custom_call.1} parent=1 // pred_check
      _
    $region55: #{tpu_custom_call.1} parent=1 // pred_check_branch
      %81 = sbr.rel (0) target = $region57
    $region56: #{tpu_custom_call.1} parent=1 // pred_region
      %82 = dma.done [#allocation6], 512
    $region57: #{tpu_custom_call.1} parent=1 // pred_fallthru
      _
    %v83 = vld [vmem:[%s0] sm:$0xff]
    %v84 = vld [vmem:[%s0 + $0x8] sm:$0xff]
    %v85 = vld [vmem:[%s0 + $0x10] sm:$0xff]
    %v86 = vld [vmem:[%s0 + $0x18] sm:$0xff]
    %v87 = vld [vmem:[#allocation2] sm:$0xff]
    %v88 = vld [vmem:[#allocation2 + $0x8] sm:$0xff]
    %v89 = vld [vmem:[%s2] sm:$0xff]
    %v90 = vld [vmem:[%s2 + $0x8] sm:$0xff]
    %v91 = vld [vmem:[%s2 + $0x10] sm:$0xff]
    %v92 = vld [vmem:[%s2 + $0x18] sm:$0xff]
    %v93 = vld [vmem:[%s2 + $0x20] sm:$0xff]
    %v94 = vld [vmem:[%s2 + $0x28] sm:$0xff]
    %v95 = vld [vmem:[%s2 + $0x30] sm:$0xff]
    %v96 = vld [vmem:[%s2 + $0x38] sm:$0xff]
    %v97 = vld [vmem:[%s3] sm:$0x1]
    %v99 = vlaneseq
    %v100 = vshrl.u32 %v99, 7
    %v101 = vsub.s32 0, %v100
    %v102 = vrot.slane %v97, %v101
    %vm104 = vcmask 523264
    %v106 = vsel %vm104, %v83, 0
    %v109 = vsel %vm104, %v84, 0
    %v112 = vsel %vm104, %v85, 0
    %v115 = vsel %vm104, %v86, 0
    %117 = vmatprep.subr.mxu0 0.0
    %118 = vmatpush1.msra.mxu0 0.0
    %119 = vmatprep.subr.mxu0 0.0
    %120 = vmatpush1.msra.mxu0 0.0
    %121 = vmatprep.subr.mxu0 0.0
    %122 = vmatpush1.msra.mxu0 0.0
    %123 = vmatprep.subr.mxu0 0.0
    %124 = vmatpush1.msra.mxu0 0.0
    %125 = vmatprep.subr.mxu0 0.0
    %126 = vmatpush1.msra.mxu0 0.0
    %127 = vmatprep.subr.mxu0 0.0
    %128 = vmatpush1.msra.mxu0 0.0
    %129 = vmatprep.subr.mxu0 0.0
    %130 = vmatpush1.msra.mxu0 0.0
    %131 = vmatprep.subr.mxu0 0.0
    %132 = vmatpush1.msra.mxu0 0.0
    %133 = vmatprep.subr.mxu0 0.0
    %134 = vmatpush1.msra.mxu0 %v96
    %135 = vmatprep.subr.mxu0 0.0
    %136 = vmatpush1.msra.mxu0 %v95
    %137 = vmatprep.subr.mxu0 0.0
    %138 = vmatpush1.msra.mxu0 %v94
    %139 = vmatprep.subr.mxu0 0.0
    %140 = vmatpush1.msra.mxu0 %v93
    %141 = vmatprep.subr.mxu0 0.0
    %142 = vmatpush1.msra.mxu0 %v92
    %143 = vmatprep.subr.mxu0 0.0
    %144 = vmatpush1.msra.mxu0 %v91
    %145 = vmatprep.subr.mxu0 0.0
    %146 = vmatpush1.msra.mxu0 %v90
    %147 = vmatprep.subr.mxu0 0.0
    %148 = vmatpush1.msra.mxu0 %v89
    %149 = vmatprep.subr.mxu0 0.0
    %150 = vmatpush2.msra.mxu0 0.0
    %151 = vmatprep.subr.mxu0 0.0
    %152 = vmatpush2.msra.mxu0 0.0
    %153 = vmatprep.subr.mxu0 0.0
    %154 = vmatpush2.msra.mxu0 0.0
    %155 = vmatprep.subr.mxu0 0.0
    %156 = vmatpush2.msra.mxu0 0.0
    %157 = vmatprep.subr.mxu0 0.0
    %158 = vmatpush2.msra.mxu0 0.0
    %159 = vmatprep.subr.mxu0 0.0
    %160 = vmatpush2.msra.mxu0 0.0
    %161 = vmatprep.subr.mxu0 0.0
    %162 = vmatpush2.msra.mxu0 0.0
    %163 = vmatprep.subr.mxu0 0.0
    %164 = vmatpush2.msra.mxu0 0.0
    %165 = vmatprep.subr.mxu0 0.0
    %166 = vmatpush2.msra.mxu0 0.0
    %167 = vmatprep.subr.mxu0 0.0
    %168 = vmatpush2.msra.mxu0 0.0
    %169 = vmatprep.subr.mxu0 0.0
    %170 = vmatpush2.msra.mxu0 0.0
    %171 = vmatprep.subr.mxu0 0.0
    %172 = vmatpush2.msra.mxu0 0.0
    %173 = vmatprep.subr.mxu0 0.0
    %174 = vmatpush2.msra.mxu0 0.0
    %175 = vmatprep.subr.mxu0 0.0
    %176 = vmatpush2.msra.mxu0 0.0
    %177 = vmatprep.subr.mxu0 0.0
    %178 = vmatpush2.msra.mxu0 0.0
    %179 = vmatprep.subr.mxu0 0.0
    %180 = vmatpush2.msra.mxu0 0.0
    %181 = vmatprep.mubr.f32.mxu0 0.0
    %182 = vmatmul.mubr.f32.gmra.mxu0 %v106
    %v183 = vpop.f32.mrf.mxu0
    %v184 = vadd.f32 %v102, %v183
    %v185 = vpop.f32.mrf.mxu0
    %186 = vmatprep.mubr.f32.mxu0 0.0
    %187 = vmatmul.mubr.f32.gmra.mxu0 %v109
    %v188 = vpop.f32.mrf.mxu0
    %v189 = vadd.f32 %v102, %v188
    %v190 = vpop.f32.mrf.mxu0
    %191 = vmatprep.mubr.f32.mxu0 0.0
    %192 = vmatmul.mubr.f32.gmra.mxu0 %v112
    %v193 = vpop.f32.mrf.mxu0
    %v194 = vadd.f32 %v102, %v193
    %v195 = vpop.f32.mrf.mxu0
    %196 = vmatprep.mubr.f32.mxu0 0.0
    %197 = vmatmul.mubr.f32.gmra.mxu0 %v115
    %v198 = vpop.f32.mrf.mxu0
    %v199 = vadd.f32 %v102, %v198
    %v200 = vpop.f32.mrf.mxu0
    %201 = vdwg.mxu0
    %v202 = vld [vmem:[%s6] sm:$0x1]
    %vm203 = vcmask 261120
    %v204 = vsel %vm203, %v87, 0.0
    %v205 = vrot.slane %v204, 4
    %v206 = vadd.f32 %v204, %v205
    %v207 = vrot.slane %v206, 2
    %v208 = vadd.f32 %v206, %v207
    %v209 = vrot.slane %v208, 1
    %v210 = vadd.f32 %v208, %v209
    %v211 = vsel %vm203, %v88, 0.0
    %v212 = vrot.slane %v211, 4
    %v213 = vadd.f32 %v211, %v212
    %v214 = vrot.slane %v213, 2
    %v215 = vadd.f32 %v213, %v214
    %v216 = vrot.slane %v215, 1
    %v217 = vadd.f32 %v215, %v216
    %v218 = vrcp.pop 8.0
    %v219 = vmul.f32 %v210, %v218
    %v220 = vmul.f32 %v217, %v218
    %v221 = vld [vmem:[#allocation5] sm:$0xff]
    %v222 = vld [vmem:[#allocation5 + $0x8] sm:$0xff]
    %v223 = vld [vmem:[#allocation5 + $0x10] sm:$0xff]
    %v224 = vld [vmem:[#allocation5 + $0x18] sm:$0xff]
    %v225 = vld [vmem:[%s5] sm:$0x1]
    %v227 = vlaneseq
    %v228 = vshrl.u32 %v227, 7
    %v229 = vsub.s32 0, %v228
    %v230 = vrot.slane %v225, %v229
    %vm234 = vcmask 1041409
    %v235 = vsel %vm234, %v220, %v219
    %v236 = vsel %vm203, %v235, 0
    %238 = vmatprep.subr.mxu0 0.0
    %239 = vmatpush1.msra.mxu0 0.0
    %240 = vmatprep.subr.mxu0 0.0
    %241 = vmatpush1.msra.mxu0 0.0
    %242 = vmatprep.subr.mxu0 0.0
    %243 = vmatpush1.msra.mxu0 0.0
    %244 = vmatprep.subr.mxu0 0.0
    %245 = vmatpush1.msra.mxu0 0.0
    %246 = vmatprep.subr.mxu0 0.0
    %247 = vmatpush1.msra.mxu0 0.0
    %248 = vmatprep.subr.mxu0 0.0
    %249 = vmatpush1.msra.mxu0 0.0
    %250 = vmatprep.subr.mxu0 0.0
    %251 = vmatpush1.msra.mxu0 0.0
    %252 = vmatprep.subr.mxu0 0.0
    %253 = vmatpush1.msra.mxu0 0.0
    %254 = vmatprep.subr.mxu0 0.0
    %255 = vmatpush1.msra.mxu0 0.0
    %256 = vmatprep.subr.mxu0 0.0
    %257 = vmatpush1.msra.mxu0 0.0
    %258 = vmatprep.subr.mxu0 0.0
    %259 = vmatpush1.msra.mxu0 0.0
    %260 = vmatprep.subr.mxu0 0.0
    %261 = vmatpush1.msra.mxu0 0.0
    %262 = vmatprep.subr.mxu0 0.0
    %263 = vmatpush1.msra.mxu0 %v224
    %264 = vmatprep.subr.mxu0 0.0
    %265 = vmatpush1.msra.mxu0 %v223
    %266 = vmatprep.subr.mxu0 0.0
    %267 = vmatpush1.msra.mxu0 %v222
    %268 = vmatprep.subr.mxu0 0.0
    %269 = vmatpush1.msra.mxu0 %v221
    %270 = vmatprep.subr.mxu0 0.0
    %271 = vmatpush2.msra.mxu0 0.0
    %272 = vmatprep.subr.mxu0 0.0
    %273 = vmatpush2.msra.mxu0 0.0
    %274 = vmatprep.subr.mxu0 0.0
    %275 = vmatpush2.msra.mxu0 0.0
    %276 = vmatprep.subr.mxu0 0.0
    %277 = vmatpush2.msra.mxu0 0.0
    %278 = vmatprep.subr.mxu0 0.0
    %279 = vmatpush2.msra.mxu0 0.0
    %280 = vmatprep.subr.mxu0 0.0
    %281 = vmatpush2.msra.mxu0 0.0
    %282 = vmatprep.subr.mxu0 0.0
    %283 = vmatpush2.msra.mxu0 0.0
    %284 = vmatprep.subr.mxu0 0.0
    %285 = vmatpush2.msra.mxu0 0.0
    %286 = vmatprep.subr.mxu0 0.0
    %287 = vmatpush2.msra.mxu0 0.0
    %288 = vmatprep.subr.mxu0 0.0
    %289 = vmatpush2.msra.mxu0 0.0
    %290 = vmatprep.subr.mxu0 0.0
    %291 = vmatpush2.msra.mxu0 0.0
    %292 = vmatprep.subr.mxu0 0.0
    %293 = vmatpush2.msra.mxu0 0.0
    %294 = vmatprep.subr.mxu0 0.0
    %295 = vmatpush2.msra.mxu0 0.0
    %296 = vmatprep.subr.mxu0 0.0
    %297 = vmatpush2.msra.mxu0 0.0
    %298 = vmatprep.subr.mxu0 0.0
    %299 = vmatpush2.msra.mxu0 0.0
    %300 = vmatprep.subr.mxu0 0.0
    %301 = vmatpush2.msra.mxu0 0.0
    %302 = vmatprep.mubr.f32.mxu0 0.0
    %303 = vmatmul.mubr.f32.gmra.mxu0 %v236
    %v304 = vpop.f32.mrf.mxu0
    %v305 = vadd.f32 %v230, %v304
    %v306 = vpop.f32.mrf.mxu0
    %307 = vdwg.mxu0
    %v310 = vunpack.c.l.s4 1966171168
    %v311 = vunpack.c.0.s8 %v310
    %v312 = vlaneseq
    %v313 = vshrl.u32 %v312, 7
    %v314 = vsub.s32 %v311, %v313
    %v315 = vrot.slane %v305, %v314
    %v316 = vcombine.high %v315, %v315
    %v318 = vunpack.c.l.s4 1966171168
    %v319 = vunpack.c.0.s8 %v318
    %v320 = vlaneseq
    %v321 = vshrl.u32 %v320, 7
    %v322 = vsub.s32 %v319, %v321
    %v323 = vrot.slane %v315, %v322
    %v325 = vunpack.c.l.s4 1966171168
    %v326 = vunpack.c.0.s8 %v325
    %v327 = vlaneseq
    %v328 = vshrl.u32 %v327, 7
    %v329 = vsub.s32 %v326, %v328
    %v330 = vrot.slane %v316, %v329
    %v331 = vlaneseq
    %v332 = vshrl.u32 %v331, 7
    %v333 = vsub.s32 0, %v332
    %v334 = vrot.slane %v323, %v333
    %v335 = vlaneseq
    %v336 = vshrl.u32 %v335, 7
    %v337 = vsub.s32 0, %v336
    %v338 = vrot.slane %v330, %v337
    %v341 = vadd.f32 %v184, %v334
    %v342 = vadd.f32 %v189, %v334
    %v343 = vadd.f32 %v194, %v338
    %v344 = vadd.f32 %v199, %v338
    %v345 = vtanh.pop %v341
    %v346 = vtanh.pop %v342
    %v347 = vtanh.pop %v343
    %v348 = vtanh.pop %v344
    %v350 = vlaneseq
    %v351 = vshrl.u32 %v350, 7
    %v352 = vsub.s32 0, %v351
    %v353 = vrot.slane %v202, %v352
    %v355 = vmul.f32 %v345, %v353
    %v356 = vmul.f32 %v346, %v353
    %v357 = vmul.f32 %v347, %v353
    %v358 = vmul.f32 %v348, %v353
    %v359 = vsel %vm203, %v355, 0.0
    %360 = vadd.xlane.f32.xlu0 %v359
    %v361 = vpop.xlane.xlu0 %360
    %v362 = vsel %vm203, %v356, 0.0
    %363 = vadd.xlane.f32.xlu0 %v362
    %v364 = vpop.xlane.xlu0 %363
    %v365 = vsel %vm203, %v357, 0.0
    %366 = vadd.xlane.f32.xlu0 %v365
    %v367 = vpop.xlane.xlu0 %366
    %v368 = vsel %vm203, %v358, 0.0
    %369 = vadd.xlane.f32.xlu0 %v368
    %v370 = vpop.xlane.xlu0 %369
    %v375 = vlaneseq
    %v376 = vand.u32 %v375, 127
    %v377 = vlaneseq
    %v378 = vshrl.u32 %v377, 7
    %v379 = vsub.s32 %v376, %v378
    %v380 = vrot.slane %v361, %v379
    %v381 = vadd.s32 %v376, 4294967288
    %v382 = vlaneseq
    %v383 = vshrl.u32 %v382, 7
    %v384 = vsub.s32 %v381, %v383
    %v385 = vrot.slane %v364, %v384
    %vm386 = vcmask 130112
    %v387 = vsel %vm386, %v385, %v380
    %v388 = vlaneseq
    %v389 = vshrl.u32 %v388, 7
    %v390 = vsub.s32 %v376, %v389
    %v391 = vrot.slane %v367, %v390
    %v392 = vlaneseq
    %v393 = vshrl.u32 %v392, 7
    %v394 = vsub.s32 %v381, %v393
    %v395 = vrot.slane %v370, %v394
    %v396 = vsel %vm386, %v395, %v391
    %v397 = vsel %vm234, %v396, %v387
    %vm399 = vcmask 123904
    %v400 = vsel %vm399, %v397, -inf
    %401 = vmax.xlane.f32.xlu0 %v400
    %v402 = vpop.xlane.xlu0 %401
    %v404 = vlaneseq
    %v405 = vshrl.u32 %v404, 7
    %v406 = vsub.s32 0, %v405
    %v407 = vrot.slane %v402, %v406
    %v408 = vlaneseq
    %v409 = vshrl.u32 %v408, 7
    %v410 = vsub.s32 1, %v409
    %v411 = vrot.slane %v402, %v410
    %v414 = vsub.f32 %v361, %v407
    %v415 = vsub.f32 %v364, %v407
    %v416 = vsub.f32 %v367, %v411
    %v417 = vsub.f32 %v370, %v411
    %v418 = vmul.f32 %v414, 1.442695
    %v419 = vpow.pop %v418
    %v420 = vmul.f32 %v415, 1.442695
    %v421 = vpow.pop %v420
    %v422 = vmul.f32 %v416, 1.442695
    %v423 = vpow.pop %v422
    %v424 = vmul.f32 %v417, 1.442695
    %v425 = vpow.pop %v424
    %430 = vset.pattern.permute.xlu0 0
    %431 = vperm.xlu0 %430, %v419
    %v432 = vpop.permute.xlu0 %431
    %433 = vset.pattern.permute.xlu0 0
    %434 = vperm.xlu0 %433, %v421
    %v435 = vpop.permute.xlu0 %434
    %436 = vset.pattern.permute.xlu0 0
    %437 = vperm.xlu0 %436, %v423
    %v438 = vpop.permute.xlu0 %437
    %439 = vset.pattern.permute.xlu0 0
    %440 = vperm.xlu0 %439, %v425
    %v441 = vpop.permute.xlu0 %440
    %v442 = vlaneseq
    %v443 = vshrl.u32 %v442, 7
    %v444 = vsub.s32 %v376, %v443
    %v445 = vrot.slane %v432, %v444
    %v446 = vlaneseq
    %v447 = vshrl.u32 %v446, 7
    %v448 = vsub.s32 %v381, %v447
    %v449 = vrot.slane %v435, %v448
    %v450 = vsel %vm386, %v449, %v445
    %v451 = vlaneseq
    %v452 = vshrl.u32 %v451, 7
    %v453 = vsub.s32 %v376, %v452
    %v454 = vrot.slane %v438, %v453
    %v455 = vlaneseq
    %v456 = vshrl.u32 %v455, 7
    %v457 = vsub.s32 %v381, %v456
    %v458 = vrot.slane %v441, %v457
    %v459 = vsel %vm386, %v458, %v454
    %v460 = vsel %vm234, %v459, %v450
    %v462 = vsel %vm399, %v460, 0.0
    %463 = vadd.xlane.f32.xlu0 %v462
    %v464 = vpop.xlane.xlu0 %463
    %v466 = vlaneseq
    %v467 = vshrl.u32 %v466, 7
    %v468 = vsub.s32 0, %v467
    %v469 = vrot.slane %v464, %v468
    %v470 = vlaneseq
    %v471 = vshrl.u32 %v470, 7
    %v472 = vsub.s32 1, %v471
    %v473 = vrot.slane %v464, %v472
    %v476 = vrcp.pop %v469
    %v477 = vmul.f32 %v419, %v476
    %v478 = vmul.f32 %v421, %v476
    %v479 = vrcp.pop %v473
    %v480 = vmul.f32 %v423, %v479
    %v481 = vmul.f32 %v425, %v479
    %483 = vset.pattern.permute.xlu0 0
    %484 = vperm.xlu0 %483, %v477
    %v485 = vpop.permute.xlu0 %484
    %488 = vset.pattern.permute.xlu0 0
    %489 = vperm.xlu0 %488, %v478
    %v490 = vpop.permute.xlu0 %489
    %493 = vset.pattern.permute.xlu0 0
    %494 = vperm.xlu0 %493, %v480
    %v495 = vpop.permute.xlu0 %494
    %498 = vset.pattern.permute.xlu0 0
    %499 = vperm.xlu0 %498, %v481
    %v500 = vpop.permute.xlu0 %499
    %v502 = vmul.f32 %v485, %v83
    %v503 = vmul.f32 %v490, %v84
    %v504 = vmul.f32 %v495, %v85
    %v505 = vmul.f32 %v500, %v86
    %v506 = vsel %vm104, %v502, 0.0
    %v507 = vsel %vm104, %v503, 0.0
    %v508 = vadd.f32 %v506, %v507
    %v509 = vrot.slane %v508, 4
    %v510 = vadd.f32 %v508, %v509
    %v511 = vrot.slane %v510, 2
    %v512 = vadd.f32 %v510, %v511
    %v513 = vrot.slane %v512, 1
    %v514 = vadd.f32 %v512, %v513
    %v515 = vsel %vm104, %v504, 0.0
    %v516 = vsel %vm104, %v505, 0.0
    %v517 = vadd.f32 %v515, %v516
    %v518 = vrot.slane %v517, 4
    %v519 = vadd.f32 %v517, %v518
    %v520 = vrot.slane %v519, 2
    %v521 = vadd.f32 %v519, %v520
    %v522 = vrot.slane %v521, 1
    %v523 = vadd.f32 %v521, %v522
    %v524 = vlaneseq
    %v525 = vshrl.u32 %v524, 7
    %v526 = vsub.s32 %v376, %v525
    %v527 = vrot.slane %v485, %v526
    %v528 = vlaneseq
    %v529 = vshrl.u32 %v528, 7
    %v530 = vsub.s32 %v381, %v529
    %v531 = vrot.slane %v490, %v530
    %v532 = vsel %vm386, %v531, %v527
    %v533 = vlaneseq
    %v534 = vshrl.u32 %v533, 7
    %v535 = vsub.s32 %v376, %v534
    %v536 = vrot.slane %v495, %v535
    %v537 = vlaneseq
    %v538 = vshrl.u32 %v537, 7
    %v539 = vsub.s32 %v381, %v538
    %v540 = vrot.slane %v500, %v539
    %v541 = vsel %vm386, %v540, %v536
    %v542 = vsel %vm234, %v541, %v532
    %544 = vst.msk [vmem:[#allocation8] sm:$0x3] %vm399, %v542
    %v545 = vld [vmem:[%s7] sm:$0xff]
    %v546 = vld [vmem:[%s7 + $0x8] sm:$0xff]
    %v547 = vld [vmem:[%s7 + $0x10] sm:$0xff]
    %v548 = vld [vmem:[%s7 + $0x18] sm:$0xff]
    %v549 = vld [vmem:[%s7 + $0x20] sm:$0xff]
    %v550 = vld [vmem:[%s7 + $0x28] sm:$0xff]
    %v551 = vld [vmem:[%s7 + $0x30] sm:$0xff]
    %v552 = vld [vmem:[%s7 + $0x38] sm:$0xff]
    %v553 = vld [vmem:[%s8] sm:$0x1]
    %v555 = vlaneseq
    %v556 = vshrl.u32 %v555, 7
    %v557 = vsub.s32 0, %v556
    %v558 = vrot.slane %v553, %v557
    %v562 = vsel %vm234, %v523, %v514
    %v563 = vsel %vm104, %v562, 0
    %565 = vmatprep.subr.mxu0 0.0
    %566 = vmatpush1.msra.mxu0 0.0
    %567 = vmatprep.subr.mxu0 0.0
    %568 = vmatpush1.msra.mxu0 0.0
    %569 = vmatprep.subr.mxu0 0.0
    %570 = vmatpush1.msra.mxu0 0.0
    %571 = vmatprep.subr.mxu0 0.0
    %572 = vmatpush1.msra.mxu0 0.0
    %573 = vmatprep.subr.mxu0 0.0
    %574 = vmatpush1.msra.mxu0 0.0
    %575 = vmatprep.subr.mxu0 0.0
    %576 = vmatpush1.msra.mxu0 0.0
    %577 = vmatprep.subr.mxu0 0.0
    %578 = vmatpush1.msra.mxu0 0.0
    %579 = vmatprep.subr.mxu0 0.0
    %580 = vmatpush1.msra.mxu0 0.0
    %581 = vmatprep.subr.mxu0 0.0
    %582 = vmatpush1.msra.mxu0 %v552
    %583 = vmatprep.subr.mxu0 0.0
    %584 = vmatpush1.msra.mxu0 %v551
    %585 = vmatprep.subr.mxu0 0.0
    %586 = vmatpush1.msra.mxu0 %v550
    %587 = vmatprep.subr.mxu0 0.0
    %588 = vmatpush1.msra.mxu0 %v549
    %589 = vmatprep.subr.mxu0 0.0
    %590 = vmatpush1.msra.mxu0 %v548
    %591 = vmatprep.subr.mxu0 0.0
    %592 = vmatpush1.msra.mxu0 %v547
    %593 = vmatprep.subr.mxu0 0.0
    %594 = vmatpush1.msra.mxu0 %v546
    %595 = vmatprep.subr.mxu0 0.0
    %596 = vmatpush1.msra.mxu0 %v545
    %597 = vmatprep.subr.mxu0 0.0
    %598 = vmatpush2.msra.mxu0 0.0
    %599 = vmatprep.subr.mxu0 0.0
    %600 = vmatpush2.msra.mxu0 0.0
    %601 = vmatprep.subr.mxu0 0.0
    %602 = vmatpush2.msra.mxu0 0.0
    %603 = vmatprep.subr.mxu0 0.0
    %604 = vmatpush2.msra.mxu0 0.0
    %605 = vmatprep.subr.mxu0 0.0
    %606 = vmatpush2.msra.mxu0 0.0
    %607 = vmatprep.subr.mxu0 0.0
    %608 = vmatpush2.msra.mxu0 0.0
    %609 = vmatprep.subr.mxu0 0.0
    %610 = vmatpush2.msra.mxu0 0.0
    %611 = vmatprep.subr.mxu0 0.0
    %612 = vmatpush2.msra.mxu0 0.0
    %613 = vmatprep.subr.mxu0 0.0
    %614 = vmatpush2.msra.mxu0 0.0
    %615 = vmatprep.subr.mxu0 0.0
    %616 = vmatpush2.msra.mxu0 0.0
    %617 = vmatprep.subr.mxu0 0.0
    %618 = vmatpush2.msra.mxu0 0.0
    %619 = vmatprep.subr.mxu0 0.0
    %620 = vmatpush2.msra.mxu0 0.0
    %621 = vmatprep.subr.mxu0 0.0
    %622 = vmatpush2.msra.mxu0 0.0
    %623 = vmatprep.subr.mxu0 0.0
    %624 = vmatpush2.msra.mxu0 0.0
    %625 = vmatprep.subr.mxu0 0.0
    %626 = vmatpush2.msra.mxu0 0.0
    %627 = vmatprep.subr.mxu0 0.0
    %628 = vmatpush2.msra.mxu0 0.0
    %629 = vmatprep.mubr.f32.mxu0 0.0
    %630 = vmatmul.mubr.f32.gmra.mxu0 %v563
    %v631 = vpop.f32.mrf.mxu0
    %v632 = vadd.f32 %v558, %v631
    %v633 = vpop.f32.mrf.mxu0
    %634 = vdwg.mxu0
    %v635 = vld [vmem:[#allocation7] sm:$0xff]
    %v636 = vld [vmem:[#allocation7 + $0x8] sm:$0xff]
    %v637 = vld [vmem:[#allocation7 + $0x10] sm:$0xff]
    %v638 = vld [vmem:[#allocation7 + $0x18] sm:$0xff]
    %v639 = vld [vmem:[%s10] sm:$0x1]
    %v641 = vlaneseq
    %v642 = vshrl.u32 %v641, 7
    %v643 = vsub.s32 0, %v642
    %v644 = vrot.slane %v639, %v643
    %646 = vmatprep.subr.mxu0 0.0
    %647 = vmatpush1.msra.mxu0 0.0
    %648 = vmatprep.subr.mxu0 0.0
    %649 = vmatpush1.msra.mxu0 0.0
    %650 = vmatprep.subr.mxu0 0.0
    %651 = vmatpush1.msra.mxu0 0.0
    %652 = vmatprep.subr.mxu0 0.0
    %653 = vmatpush1.msra.mxu0 0.0
    %654 = vmatprep.subr.mxu0 0.0
    %655 = vmatpush1.msra.mxu0 0.0
    %656 = vmatprep.subr.mxu0 0.0
    %657 = vmatpush1.msra.mxu0 0.0
    %658 = vmatprep.subr.mxu0 0.0
    %659 = vmatpush1.msra.mxu0 0.0
    %660 = vmatprep.subr.mxu0 0.0
    %661 = vmatpush1.msra.mxu0 0.0
    %662 = vmatprep.subr.mxu0 0.0
    %663 = vmatpush1.msra.mxu0 0.0
    %664 = vmatprep.subr.mxu0 0.0
    %665 = vmatpush1.msra.mxu0 0.0
    %666 = vmatprep.subr.mxu0 0.0
    %667 = vmatpush1.msra.mxu0 0.0
    %668 = vmatprep.subr.mxu0 0.0
    %669 = vmatpush1.msra.mxu0 0.0
    %670 = vmatprep.subr.mxu0 0.0
    %671 = vmatpush1.msra.mxu0 %v638
    %672 = vmatprep.subr.mxu0 0.0
    %673 = vmatpush1.msra.mxu0 %v637
    %674 = vmatprep.subr.mxu0 0.0
    %675 = vmatpush1.msra.mxu0 %v636
    %676 = vmatprep.subr.mxu0 0.0
    %677 = vmatpush1.msra.mxu0 %v635
    %678 = vmatprep.subr.mxu0 0.0
    %679 = vmatpush2.msra.mxu0 0.0
    %680 = vmatprep.subr.mxu0 0.0
    %681 = vmatpush2.msra.mxu0 0.0
    %682 = vmatprep.subr.mxu0 0.0
    %683 = vmatpush2.msra.mxu0 0.0
    %684 = vmatprep.subr.mxu0 0.0
    %685 = vmatpush2.msra.mxu0 0.0
    %686 = vmatprep.subr.mxu0 0.0
    %687 = vmatpush2.msra.mxu0 0.0
    %688 = vmatprep.subr.mxu0 0.0
    %689 = vmatpush2.msra.mxu0 0.0
    %690 = vmatprep.subr.mxu0 0.0
    %691 = vmatpush2.msra.mxu0 0.0
    %692 = vmatprep.subr.mxu0 0.0
    %693 = vmatpush2.msra.mxu0 0.0
    %694 = vmatprep.subr.mxu0 0.0
    %695 = vmatpush2.msra.mxu0 0.0
    %696 = vmatprep.subr.mxu0 0.0
    %697 = vmatpush2.msra.mxu0 0.0
    %698 = vmatprep.subr.mxu0 0.0
    %699 = vmatpush2.msra.mxu0 0.0
    %700 = vmatprep.subr.mxu0 0.0
    %701 = vmatpush2.msra.mxu0 0.0
    %702 = vmatprep.subr.mxu0 0.0
    %703 = vmatpush2.msra.mxu0 0.0
    %704 = vmatprep.subr.mxu0 0.0
    %705 = vmatpush2.msra.mxu0 0.0
    %706 = vmatprep.subr.mxu0 0.0
    %707 = vmatpush2.msra.mxu0 0.0
    %708 = vmatprep.subr.mxu0 0.0
    %709 = vmatpush2.msra.mxu0 0.0
    %710 = vmatprep.mubr.f32.mxu0 0.0
    %711 = vmatmul.mubr.f32.gmra.mxu0 %v236
    %v712 = vpop.f32.mrf.mxu0
    %v713 = vadd.f32 %v644, %v712
    %v714 = vpop.f32.mrf.mxu0
    %715 = vdwg.mxu0
    %v716 = vadd.f32 %v632, %v713
    %v717 = vxor.u32 %v716, 2147483648
    %v718 = vmul.f32 %v717, 1.442695
    %v719 = vpow.pop %v718
    %v720 = vadd.f32 %v719, 1.0
    %v721 = vrcp.pop %v720
    %v722 = vmul.f32 1.0, %v721
    %724 = vrot.lane.b32.xlu0 %v713, 64
    %v725 = vpop.permute.xlu0 %724
    %v727 = vmul.f32 %v722, %v725
    %729 = vrot.lane.b32.xlu0 %v727, 64
    %v730 = vpop.permute.xlu0 %729
    %v732 = vadd.f32 %v632, %v730
    %v733 = vtanh.pop %v732
    %v734 = vsub.f32 1.0, %v722
    %736 = vrot.lane.b32.xlu0 %v733, 96
    %v737 = vpop.permute.xlu0 %736
    %v739 = vmul.f32 %v734, %v737
    %740 = vrot.lane.b32.xlu0 %v235, 32
    %v741 = vpop.permute.xlu0 %740
    %v743 = vmul.f32 %v722, %v741
    %v744 = vadd.f32 %v739, %v743
    %v745 = vld [vmem:[#allocation5] sm:$0xff]
    %v746 = vld [vmem:[#allocation5 + $0x8] sm:$0xff]
    %v747 = vld [vmem:[#allocation5 + $0x10] sm:$0xff]
    %v748 = vld [vmem:[#allocation5 + $0x18] sm:$0xff]
    %v749 = vld [vmem:[%s5] sm:$0x1]
    %v751 = vlaneseq
    %v752 = vshrl.u32 %v751, 7
    %v753 = vsub.s32 0, %v752
    %v754 = vrot.slane %v749, %v753
    %757 = vrot.lane.b32.xlu0 %v744, 96
    %v758 = vpop.permute.xlu0 %757
    %v759 = vsel %vm203, %v758, 0
    %761 = vmatprep.subr.mxu0 0.0
    %762 = vmatpush1.msra.mxu0 0.0
    %763 = vmatprep.subr.mxu0 0.0
    %764 = vmatpush1.msra.mxu0 0.0
    %765 = vmatprep.subr.mxu0 0.0
    %766 = vmatpush1.msra.mxu0 0.0
    %767 = vmatprep.subr.mxu0 0.0
    %768 = vmatpush1.msra.mxu0 0.0
    %769 = vmatprep.subr.mxu0 0.0
    %770 = vmatpush1.msra.mxu0 0.0
    %771 = vmatprep.subr.mxu0 0.0
    %772 = vmatpush1.msra.mxu0 0.0
    %773 = vmatprep.subr.mxu0 0.0
    %774 = vmatpush1.msra.mxu0 0.0
    %775 = vmatprep.subr.mxu0 0.0
    %776 = vmatpush1.msra.mxu0 0.0
    %777 = vmatprep.subr.mxu0 0.0
    %778 = vmatpush1.msra.mxu0 0.0
    %779 = vmatprep.subr.mxu0 0.0
    %780 = vmatpush1.msra.mxu0 0.0
    %781 = vmatprep.subr.mxu0 0.0
    %782 = vmatpush1.msra.mxu0 0.0
    %783 = vmatprep.subr.mxu0 0.0
    %784 = vmatpush1.msra.mxu0 0.0
    %785 = vmatprep.subr.mxu0 0.0
    %786 = vmatpush1.msra.mxu0 %v748
    %787 = vmatprep.subr.mxu0 0.0
    %788 = vmatpush1.msra.mxu0 %v747
    %789 = vmatprep.subr.mxu0 0.0
    %790 = vmatpush1.msra.mxu0 %v746
    %791 = vmatprep.subr.mxu0 0.0
    %792 = vmatpush1.msra.mxu0 %v745
    %793 = vmatprep.subr.mxu0 0.0
    %794 = vmatpush2.msra.mxu0 0.0
    %795 = vmatprep.subr.mxu0 0.0
    %796 = vmatpush2.msra.mxu0 0.0
    %797 = vmatprep.subr.mxu0 0.0
    %798 = vmatpush2.msra.mxu0 0.0
    %799 = vmatprep.subr.mxu0 0.0
    %800 = vmatpush2.msra.mxu0 0.0
    %801 = vmatprep.subr.mxu0 0.0
    %802 = vmatpush2.msra.mxu0 0.0
    %803 = vmatprep.subr.mxu0 0.0
    %804 = vmatpush2.msra.mxu0 0.0
    %805 = vmatprep.subr.mxu0 0.0
    %806 = vmatpush2.msra.mxu0 0.0
    %807 = vmatprep.subr.mxu0 0.0
    %808 = vmatpush2.msra.mxu0 0.0
    %809 = vmatprep.subr.mxu0 0.0
    %810 = vmatpush2.msra.mxu0 0.0
    %811 = vmatprep.subr.mxu0 0.0
    %812 = vmatpush2.msra.mxu0 0.0
    %813 = vmatprep.subr.mxu0 0.0
    %814 = vmatpush2.msra.mxu0 0.0
    %815 = vmatprep.subr.mxu0 0.0
    %816 = vmatpush2.msra.mxu0 0.0
    %817 = vmatprep.subr.mxu0 0.0
    %818 = vmatpush2.msra.mxu0 0.0
    %819 = vmatprep.subr.mxu0 0.0
    %820 = vmatpush2.msra.mxu0 0.0
    %821 = vmatprep.subr.mxu0 0.0
    %822 = vmatpush2.msra.mxu0 0.0
    %823 = vmatprep.subr.mxu0 0.0
    %824 = vmatpush2.msra.mxu0 0.0
    %825 = vmatprep.mubr.f32.mxu0 0.0
    %826 = vmatmul.mubr.f32.gmra.mxu0 %v759
    %v827 = vpop.f32.mrf.mxu0
    %v828 = vadd.f32 %v754, %v827
    %v829 = vpop.f32.mrf.mxu0
    %830 = vdwg.mxu0
    %v833 = vunpack.c.l.s4 1966171168
    %v834 = vunpack.c.0.s8 %v833
    %v835 = vlaneseq
    %v836 = vshrl.u32 %v835, 7
    %v837 = vsub.s32 %v834, %v836
    %v838 = vrot.slane %v828, %v837
    %v839 = vcombine.high %v838, %v838
    %v841 = vunpack.c.l.s4 1966171168
    %v842 = vunpack.c.0.s8 %v841
    %v843 = vlaneseq
    %v844 = vshrl.u32 %v843, 7
    %v845 = vsub.s32 %v842, %v844
    %v846 = vrot.slane %v838, %v845
    %v848 = vunpack.c.l.s4 1966171168
    %v849 = vunpack.c.0.s8 %v848
    %v850 = vlaneseq
    %v851 = vshrl.u32 %v850, 7
    %v852 = vsub.s32 %v849, %v851
    %v853 = vrot.slane %v839, %v852
    %v854 = vlaneseq
    %v855 = vshrl.u32 %v854, 7
    %v856 = vsub.s32 0, %v855
    %v857 = vrot.slane %v846, %v856
    %v858 = vlaneseq
    %v859 = vshrl.u32 %v858, 7
    %v860 = vsub.s32 0, %v859
    %v861 = vrot.slane %v853, %v860
    %v864 = vadd.f32 %v184, %v857
    %v865 = vadd.f32 %v189, %v857
    %v866 = vadd.f32 %v194, %v861
    %v867 = vadd.f32 %v199, %v861
    %v868 = vtanh.pop %v864
    %v869 = vtanh.pop %v865
    %v870 = vtanh.pop %v866
    %v871 = vtanh.pop %v867
    %v872 = vmul.f32 %v868, %v353
    %v873 = vmul.f32 %v869, %v353
    %v874 = vmul.f32 %v870, %v353
    %v875 = vmul.f32 %v871, %v353
    %v876 = vsel %vm203, %v872, 0.0
    %877 = vadd.xlane.f32.xlu0 %v876
    %v878 = vpop.xlane.xlu0 %877
    %v879 = vsel %vm203, %v873, 0.0
    %880 = vadd.xlane.f32.xlu0 %v879
    %v881 = vpop.xlane.xlu0 %880
    %v882 = vsel %vm203, %v874, 0.0
    %883 = vadd.xlane.f32.xlu0 %v882
    %v884 = vpop.xlane.xlu0 %883
    %v885 = vsel %vm203, %v875, 0.0
    %886 = vadd.xlane.f32.xlu0 %v885
    %v887 = vpop.xlane.xlu0 %886
    %v892 = vlaneseq
    %v893 = vshrl.u32 %v892, 7
    %v894 = vsub.s32 %v376, %v893
    %v895 = vrot.slane %v878, %v894
    %v896 = vlaneseq
    %v897 = vshrl.u32 %v896, 7
    %v898 = vsub.s32 %v381, %v897
    %v899 = vrot.slane %v881, %v898
    %v900 = vsel %vm386, %v899, %v895
    %v901 = vlaneseq
    %v902 = vshrl.u32 %v901, 7
    %v903 = vsub.s32 %v376, %v902
    %v904 = vrot.slane %v884, %v903
    %v905 = vlaneseq
    %v906 = vshrl.u32 %v905, 7
    %v907 = vsub.s32 %v381, %v906
    %v908 = vrot.slane %v887, %v907
    %v909 = vsel %vm386, %v908, %v904
    %v910 = vsel %vm234, %v909, %v900
    %v912 = vsel %vm399, %v910, -inf
    %913 = vmax.xlane.f32.xlu0 %v912
    %v914 = vpop.xlane.xlu0 %913
    %v916 = vlaneseq
    %v917 = vshrl.u32 %v916, 7
    %v918 = vsub.s32 0, %v917
    %v919 = vrot.slane %v914, %v918
    %v920 = vlaneseq
    %v921 = vshrl.u32 %v920, 7
    %v922 = vsub.s32 1, %v921
    %v923 = vrot.slane %v914, %v922
    %v926 = vsub.f32 %v878, %v919
    %v927 = vsub.f32 %v881, %v919
    %v928 = vsub.f32 %v884, %v923
    %v929 = vsub.f32 %v887, %v923
    %v930 = vmul.f32 %v926, 1.442695
    %v931 = vpow.pop %v930
    %v932 = vmul.f32 %v927, 1.442695
    %v933 = vpow.pop %v932
    %v934 = vmul.f32 %v928, 1.442695
    %v935 = vpow.pop %v934
    %v936 = vmul.f32 %v929, 1.442695
    %v937 = vpow.pop %v936
    %942 = vset.pattern.permute.xlu0 0
    %943 = vperm.xlu0 %942, %v931
    %v944 = vpop.permute.xlu0 %943
    %945 = vset.pattern.permute.xlu0 0
    %946 = vperm.xlu0 %945, %v933
    %v947 = vpop.permute.xlu0 %946
    %948 = vset.pattern.permute.xlu0 0
    %949 = vperm.xlu0 %948, %v935
    %v950 = vpop.permute.xlu0 %949
    %951 = vset.pattern.permute.xlu0 0
    %952 = vperm.xlu0 %951, %v937
    %v953 = vpop.permute.xlu0 %952
    %v954 = vlaneseq
    %v955 = vshrl.u32 %v954, 7
    %v956 = vsub.s32 %v376, %v955
    %v957 = vrot.slane %v944, %v956
    %v958 = vlaneseq
    %v959 = vshrl.u32 %v958, 7
    %v960 = vsub.s32 %v381, %v959
    %v961 = vrot.slane %v947, %v960
    %v962 = vsel %vm386, %v961, %v957
    %v963 = vlaneseq
    %v964 = vshrl.u32 %v963, 7
    %v965 = vsub.s32 %v376, %v964
    %v966 = vrot.slane %v950, %v965
    %v967 = vlaneseq
    %v968 = vshrl.u32 %v967, 7
    %v969 = vsub.s32 %v381, %v968
    %v970 = vrot.slane %v953, %v969
    %v971 = vsel %vm386, %v970, %v966
    %v972 = vsel %vm234, %v971, %v962
    %v974 = vsel %vm399, %v972, 0.0
    %975 = vadd.xlane.f32.xlu0 %v974
    %v976 = vpop.xlane.xlu0 %975
    %v978 = vlaneseq
    %v979 = vshrl.u32 %v978, 7
    %v980 = vsub.s32 0, %v979
    %v981 = vrot.slane %v976, %v980
    %v982 = vlaneseq
    %v983 = vshrl.u32 %v982, 7
    %v984 = vsub.s32 1, %v983
    %v985 = vrot.slane %v976, %v984
    %v988 = vrcp.pop %v981
    %v989 = vmul.f32 %v931, %v988
    %v990 = vmul.f32 %v933, %v988
    %v991 = vrcp.pop %v985
    %v992 = vmul.f32 %v935, %v991
    %v993 = vmul.f32 %v937, %v991
    %998 = vset.pattern.permute.xlu0 0
    %999 = vperm.xlu0 %998, %v989
    %v1000 = vpop.permute.xlu0 %999
    %1001 = vset.pattern.permute.xlu0 0
    %1002 = vperm.xlu0 %1001, %v990
    %v1003 = vpop.permute.xlu0 %1002
    %1004 = vset.pattern.permute.xlu0 0
    %1005 = vperm.xlu0 %1004, %v992
    %v1006 = vpop.permute.xlu0 %1005
    %1007 = vset.pattern.permute.xlu0 0
    %1008 = vperm.xlu0 %1007, %v993
    %v1009 = vpop.permute.xlu0 %1008
    %v1010 = vlaneseq
    %v1011 = vshrl.u32 %v1010, 7
    %v1012 = vsub.s32 %v376, %v1011
    %v1013 = vrot.slane %v1000, %v1012
    %v1014 = vlaneseq
    %v1015 = vshrl.u32 %v1014, 7
    %v1016 = vsub.s32 %v381, %v1015
    %v1017 = vrot.slane %v1003, %v1016
    %v1018 = vsel %vm386, %v1017, %v1013
    %v1019 = vlaneseq
    %v1020 = vshrl.u32 %v1019, 7
    %v1021 = vsub.s32 %v376, %v1020
    %v1022 = vrot.slane %v1006, %v1021
    %v1023 = vlaneseq
    %v1024 = vshrl.u32 %v1023, 7
    %v1025 = vsub.s32 %v381, %v1024
    %v1026 = vrot.slane %v1009, %v1025
    %v1027 = vsel %vm386, %v1026, %v1022
    %v1028 = vsel %vm234, %v1027, %v1018
    %1030 = vst.msk [vmem:[#allocation9] sm:$0x3] %vm399, %v1028
    // Predicated region
    $region58: #{tpu_custom_call.1} parent=1 // pred_check
      _
    $region59: #{tpu_custom_call.1} parent=1 // pred_check_branch
      %1032 = sbr.rel (0) target = $region61
    $region60: #{tpu_custom_call.1} parent=1 // pred_region
      %s1034 = ssub.s32 32, 32
      %1035 = vsyncadd [#allocation4], %s1034
      %s1037 = sshll.u32 [#allocation8], 4
      %s1038 = int_to_ptr.vmem [resolvable:$true] %s1037
      %1040 = dma.vmem_to_hbm [thread:$0]  %s1038, 32, %s11, [#allocation4]
    $region61: #{tpu_custom_call.1} parent=1 // pred_fallthru
      _
    // Predicated region
    $region62: #{tpu_custom_call.1} parent=1 // pred_check
      _
    $region63: #{tpu_custom_call.1} parent=1 // pred_check_branch
      %1042 = sbr.rel (0) target = $region65
    $region64: #{tpu_custom_call.1} parent=1 // pred_region
      %s1044 = ssub.s32 32, 32
      %1045 = vsyncadd [#allocation10], %s1044
      %s1047 = sshll.u32 [#allocation9], 4
      %s1048 = int_to_ptr.vmem [resolvable:$true] %s1047
      %1050 = dma.vmem_to_hbm [thread:$0]  %s1048, 32, %s12, [#allocation10]
    $region65: #{tpu_custom_call.1} parent=1 // pred_fallthru
      _
    // Predicated region
    $region66: #{tpu_custom_call.1} parent=1 // pred_check
      _
    $region67: #{tpu_custom_call.1} parent=1 // pred_check_branch
      %1052 = sbr.rel (0) target = $region69
    $region68: #{tpu_custom_call.1} parent=1 // pred_region
      %1053 = dma.done [#allocation4], 32
    $region69: #{tpu_custom_call.1} parent=1 // pred_fallthru
      _
    // Predicated region
    $region70: #{tpu_custom_call.1} parent=1 // pred_check
      _
    $region71: #{tpu_custom_call.1} parent=1 // pred_check_branch
      %1055 = sbr.rel (0) target = $region73
    $region72: #{tpu_custom_call.1} parent=1 // pred_region
      %1056 = dma.done [#allocation10], 32
    $region73: #{tpu_custom_call.1} parent=1 // pred_fallthru
      _
    %1057 = vsyncpa [#allocation3], 1
    %1058 = vsyncpa [#allocation6], 1
    %1059 = vsyncpa [#allocation4], 1
    %1060 = vsyncpa [#allocation10], 1

</llo_original>
